<compile_context>
chip_gen: v5e
topology: v5e:2x2
jax: 0.10.0
libtpu: 0.0.40
codegen_flags: <defaults>
</compile_context>

<pallas_src>
import jax
import jax.numpy as jnp
from jax.experimental import pallas as pl
from jax.experimental.pallas import tpu as pltpu


def _round_up(n, m):
    return ((n + m - 1) // m) * m


def _pick_time_chunk(T, max_tc=64):
    """Largest sublane-aligned (multiple of 8) divisor of T, else the full T."""
    best = None
    for c in range(8, min(T, max_tc) + 1, 8):
        if T % c == 0:
            best = c
    return best if best is not None else T


def _rnn_chunk_kernel(x_ref, h0_ref, wih_ref, whh_ref, b_ref, wlin_ref, blin_ref,
                      out_ref, hfin_ref, h_scratch, hs_scratch):
    c = pl.program_id(0)
    B_p, Tc, I_p = x_ref.shape
    H_p = whh_ref.shape[0]
    O_p = wlin_ref.shape[1]

    # Initialize the recurrent state from h0 on the first chunk.
    @pl.when(c == 0)
    def _():
        h_scratch[...] = h0_ref[...]

    # Hoisted input projection: one (B*Tc, I) x (I, H) MXU matmul per chunk.
    # (Collapse of the leading dims is layout-free since Tc is a multiple of 8
    # or the full time extent, and I_p/H_p are lane-aligned.)
    x2d = x_ref[...].reshape(B_p * Tc, I_p)
    gx = (jnp.dot(x2d, wih_ref[...], preferred_element_type=jnp.float32)
          + b_ref[...]).reshape(B_p, Tc, H_p)

    whh = whh_ref[...]                     # read once per chunk
    h = h_scratch[...]
    # Sequential recurrence over the chunk; only h @ W_hh^T is serial.
    for i in range(Tc):                    # static unroll (Tc is compile-time)
        h = jnp.tanh(gx[:, i, :]
                     + jnp.dot(h, whh, preferred_element_type=jnp.float32))
        hs_scratch[:, i, :] = h
    h_scratch[...] = h

    # Hoisted output head: one (B*Tc, H) x (H, O_p) matmul, lane-dense store.
    hs2d = hs_scratch[...].reshape(B_p * Tc, H_p)
    out_ref[...] = (jnp.dot(hs2d, wlin_ref[...], preferred_element_type=jnp.float32)
                    + blin_ref[...]).reshape(B_p, Tc, O_p).astype(out_ref.dtype)

    # Commit the final hidden state on the last chunk.
    @pl.when(c == pl.num_programs(0) - 1)
    def _():
        hfin_ref[...] = h.astype(hfin_ref.dtype)


@jax.jit
def rnn_forward(x, hidden, params):
    """x: (B, T, input_size) f32, hidden: (1, B, hidden_size) f32.

    Returns (out, hidden_out) matching PyTorch's forward:
      out: (B, T, output_size), hidden_out: (1, B, hidden_size)
    """
    w_ih, w_hh = params["w_ih"], params["w_hh"]
    b_ih, b_hh = params["b_ih"], params["b_hh"]
    w_lin, b_lin = params["w_lin"], params["b_lin"]

    B, T, I = x.shape
    H = w_ih.shape[0]
    O = w_lin.shape[0]

    # Pad to vreg tiles: batch -> sublane multiple of 8, features -> lane 128.
    B_p = _round_up(B, 8)
    I_p = _round_up(I, 128)
    H_p = _round_up(H, 128)
    O_p = _round_up(O, 128)
    Tc = _pick_time_chunk(T)
    n_chunks = T // Tc

    f32 = jnp.float32
    x_p = jnp.pad(x.astype(f32), ((0, B_p - B), (0, 0), (0, I_p - I)))
    h0_p = jnp.pad(hidden[0].astype(f32), ((0, B_p - B), (0, H_p - H)))
    wih_t = jnp.pad(w_ih.T.astype(f32), ((0, I_p - I), (0, H_p - H)))
    whh_t = jnp.pad(w_hh.T.astype(f32), ((0, H_p - H), (0, H_p - H)))
    b_rnn = jnp.pad((b_ih + b_hh).astype(f32)[None, :], ((0, 0), (0, H_p - H)))
    wlin_t = jnp.pad(w_lin.T.astype(f32), ((0, H_p - H), (0, O_p - O)))
    blin_p = jnp.pad(b_lin.astype(f32)[None, :], ((0, 0), (0, O_p - O)))

    out_p, hfin_p = pl.pallas_call(
        _rnn_chunk_kernel,
        out_shape=(
            jax.ShapeDtypeStruct((B_p, T, O_p), f32),
            jax.ShapeDtypeStruct((B_p, H_p), f32),
        ),
        grid_spec=pltpu.PrefetchScalarGridSpec(
            num_scalar_prefetch=0,
            grid=(n_chunks,),
            in_specs=[
                pl.BlockSpec((B_p, Tc, I_p), lambda c: (0, c, 0)),   # x chunk
                pl.BlockSpec((B_p, H_p), lambda c: (0, 0)),          # h0
                pl.BlockSpec((I_p, H_p), lambda c: (0, 0)),          # W_ih^T
                pl.BlockSpec((H_p, H_p), lambda c: (0, 0)),          # W_hh^T
                pl.BlockSpec((1, H_p), lambda c: (0, 0)),            # b_ih + b_hh
                pl.BlockSpec((H_p, O_p), lambda c: (0, 0)),          # W_lin^T
                pl.BlockSpec((1, O_p), lambda c: (0, 0)),            # b_lin
            ],
            out_specs=[
                pl.BlockSpec((B_p, Tc, O_p), lambda c: (0, c, 0)),   # out chunk
                pl.BlockSpec((B_p, H_p), lambda c: (0, 0)),          # final hidden
            ],
            scratch_shapes=[
                pltpu.VMEM((B_p, H_p), f32),        # recurrent hidden state
                pltpu.VMEM((B_p, Tc, H_p), f32),    # per-chunk hidden states
            ],
        ),
        compiler_params=pltpu.CompilerParams(
            dimension_semantics=("arbitrary",)),     # time recurrence is serial
    )(x_p, h0_p, wih_t, whh_t, b_rnn, wlin_t, blin_p)

    out = out_p[:B, :, :O]                  # strip padding
    hidden_out = hfin_p[:B, :H][None]       # (1, B, H)
    return out, hidden_out


def init_params(key, input_size, hidden_size, output_size):
    k = jax.random.split(key, 6)
    s_rnn = 1.0 / jnp.sqrt(hidden_size)
    s_lin = 1.0 / jnp.sqrt(hidden_size)
    return {
        "w_ih": jax.random.uniform(k[0], (hidden_size, input_size),
                                   jnp.float32, -s_rnn, s_rnn),
        "w_hh": jax.random.uniform(k[1], (hidden_size, hidden_size),
                                   jnp.float32, -s_rnn, s_rnn),
        "b_ih": jax.random.uniform(k[2], (hidden_size,),
                                   jnp.float32, -s_rnn, s_rnn),
        "b_hh": jax.random.uniform(k[3], (hidden_size,),
                                   jnp.float32, -s_rnn, s_rnn),
        "w_lin": jax.random.uniform(k[4], (output_size, hidden_size),
                                    jnp.float32, -s_lin, s_lin),
        "b_lin": jax.random.uniform(k[5], (output_size,),
                                    jnp.float32, -s_lin, s_lin),
    }


def _reference(x, hidden, params):
    # Pure-JAX reference of PyTorch nn.RNN(tanh) + nn.Linear forward.
    w_ih, w_hh, b_ih, b_hh = params["w_ih"], params["w_hh"], params["b_ih"], params["b_hh"]
    w_lin, b_lin = params["w_lin"], params["b_lin"]
    h = hidden[0]
    outs = []
    for t in range(x.shape[1]):
        h = jnp.tanh(x[:, t] @ w_ih.T + b_ih + h @ w_hh.T + b_hh)
        outs.append(h @ w_lin.T + b_lin)
    return jnp.stack(outs, axis=1), h[None]


if __name__ == "__main__":
    B, T, I, H, O = 2, 8, 4, 32, 8
    key = jax.random.PRNGKey(0)
    kx, kh, kp = jax.random.split(key, 3)

    x = jax.random.normal(kx, (B, T, I), jnp.float32)
    hidden = jax.random.normal(kh, (1, B, H), jnp.float32)
    params = init_params(kp, I, H, O)

    out, h_out = rnn_forward(x, hidden, params)
    out = jax.block_until_ready(out)
    h_out = jax.block_until_ready(h_out)

    out_ref, h_ref = _reference(x, hidden, params)
    assert out.shape == (B, T, O) and h_out.shape == (1, B, H)
    assert jnp.allclose(out, out_ref, atol=1e-5, rtol=1e-5)
    assert jnp.allclose(h_out, h_ref, atol=1e-5, rtol=1e-5)

    print("KERNEL_OK")
</pallas_src>

<mosaic_0001>
module attributes {stable_mosaic.version = 11 : i64} {
  func.func @_rnn_chunk_kernel(%arg0: i32, %arg1: memref<8x8x128xf32, #tpu.memory_space<vmem>>, %arg2: memref<8x128xf32, #tpu.memory_space<vmem>>, %arg3: memref<128x128xf32, #tpu.memory_space<vmem>>, %arg4: memref<128x128xf32, #tpu.memory_space<vmem>>, %arg5: memref<1x128xf32, #tpu.memory_space<vmem>>, %arg6: memref<128x128xf32, #tpu.memory_space<vmem>>, %arg7: memref<1x128xf32, #tpu.memory_space<vmem>>, %arg8: memref<8x8x128xf32, #tpu.memory_space<vmem>>, %arg9: memref<8x128xf32, #tpu.memory_space<vmem>>, %arg10: memref<8x128xf32, #tpu.memory_space<vmem>>, %arg11: memref<8x8x128xf32, #tpu.memory_space<vmem>>) attributes {dimension_semantics = [#tpu.dimension_semantics<arbitrary>], iteration_bounds = array<i64: 1>, scalar_prefetch = 0 : i64, scratch_operands = 2 : i64, tpu.core_type = #tpu.core_type<tc>, window_params = [{transform_indices = @transform_0, window_bounds = array<i64: 8, 8, 128>}, {pipeline_mode = #tpu.pipeline_mode<synchronous>, transform_indices = @transform_1, window_bounds = array<i64: 8, 128>}, {pipeline_mode = #tpu.pipeline_mode<synchronous>, transform_indices = @transform_2, window_bounds = array<i64: 128, 128>}, {pipeline_mode = #tpu.pipeline_mode<synchronous>, transform_indices = @transform_3, window_bounds = array<i64: 128, 128>}, {pipeline_mode = #tpu.pipeline_mode<synchronous>, transform_indices = @transform_4, window_bounds = array<i64: 1, 128>}, {pipeline_mode = #tpu.pipeline_mode<synchronous>, transform_indices = @transform_5, window_bounds = array<i64: 128, 128>}, {pipeline_mode = #tpu.pipeline_mode<synchronous>, transform_indices = @transform_6, window_bounds = array<i64: 1, 128>}, {transform_indices = @transform_7, window_bounds = array<i64: 8, 8, 128>}, {pipeline_mode = #tpu.pipeline_mode<synchronous>, transform_indices = @transform_8, window_bounds = array<i64: 8, 128>}]} {
    %c0_i32 = arith.constant 0 : i32
    %0 = arith.cmpi eq, %arg0, %c0_i32 : i32
    %1 = arith.extui %0 : i1 to i32
    %c0_i32_0 = arith.constant 0 : i32
    %2 = arith.cmpi ne, %1, %c0_i32_0 : i32
    scf.if %2 {
      %c0_51 = arith.constant 0 : index
      %c0_52 = arith.constant 0 : index
      %90 = vector.load %arg2[%c0_51, %c0_52] : memref<8x128xf32, #tpu.memory_space<vmem>>, vector<8x128xf32>
      %c0_53 = arith.constant 0 : index
      %c0_54 = arith.constant 0 : index
      %91 = vector.load %arg10[%c0_53, %c0_54] : memref<8x128xf32, #tpu.memory_space<vmem>>, vector<8x128xf32>
      tpu.vector_store %arg10[%c0_53, %c0_54], %90 {strides = array<i32>} : memref<8x128xf32, #tpu.memory_space<vmem>>, vector<8x128xf32>,
    } else {
    }
    %c0 = arith.constant 0 : index
    %c0_1 = arith.constant 0 : index
    %c0_2 = arith.constant 0 : index
    %3 = vector.load %arg1[%c0, %c0_1, %c0_2] : memref<8x8x128xf32, #tpu.memory_space<vmem>>, vector<8x8x128xf32>
    %4 = vector.shape_cast %3 : vector<8x8x128xf32> to vector<64x128xf32>
    %c0_3 = arith.constant 0 : index
    %c0_4 = arith.constant 0 : index
    %5 = vector.load %arg3[%c0_3, %c0_4] : memref<128x128xf32, #tpu.memory_space<vmem>>, vector<128x128xf32>
    %cst = arith.constant dense<0.000000e+00> : vector<64x128xf32>
    %6 = tpu.matmul %4, %5, %cst {dimension_numbers = #tpu.dot_dimension_numbers<[1], [0], [0], [1], [0, 0, 1, 1], [], []>} : vector<64x128xf32>, vector<128x128xf32>, vector<64x128xf32> -> vector<64x128xf32>
    %c0_5 = arith.constant 0 : index
    %c0_6 = arith.constant 0 : index
    %7 = vector.load %arg5[%c0_5, %c0_6] : memref<1x128xf32, #tpu.memory_space<vmem>>, vector<1x128xf32>
    %8 = vector.broadcast %7 : vector<1x128xf32> to vector<64x128xf32>
    %9 = arith.addf %6, %8 : vector<64x128xf32>
    %10 = vector.shape_cast %9 : vector<64x128xf32> to vector<8x8x128xf32>
    %c0_7 = arith.constant 0 : index
    %c0_8 = arith.constant 0 : index
    %11 = vector.load %arg4[%c0_7, %c0_8] : memref<128x128xf32, #tpu.memory_space<vmem>>, vector<128x128xf32>
    %c0_9 = arith.constant 0 : index
    %c0_10 = arith.constant 0 : index
    %12 = vector.load %arg10[%c0_9, %c0_10] : memref<8x128xf32, #tpu.memory_space<vmem>>, vector<8x128xf32>
    %13 = vector.extract_strided_slice %10 {offsets = [0, 0, 0], sizes = [8, 1, 128], strides = [1, 1, 1]} : vector<8x8x128xf32> to vector<8x1x128xf32>
    %14 = vector.shape_cast %13 : vector<8x1x128xf32> to vector<8x128xf32>
    %cst_11 = arith.constant dense<0.000000e+00> : vector<8x128xf32>
    %15 = tpu.matmul %12, %11, %cst_11 {dimension_numbers = #tpu.dot_dimension_numbers<[1], [0], [0], [1], [0, 0, 1, 1], [], []>} : vector<8x128xf32>, vector<128x128xf32>, vector<8x128xf32> -> vector<8x128xf32>
    %16 = arith.addf %14, %15 : vector<8x128xf32>
    %17 = math.tanh %16 : vector<8x128xf32>
    %c0_12 = arith.constant 0 : index
    %c0_13 = arith.constant 0 : index
    %c0_14 = arith.constant 0 : index
    %18 = vector.load %arg11[%c0_12, %c0_13, %c0_14] : memref<8x8x128xf32, #tpu.memory_space<vmem>>, vector<8x1x128xf32>
    %19 = vector.shape_cast %18 : vector<8x1x128xf32> to vector<8x128xf32>
    %20 = vector.shape_cast %17 : vector<8x128xf32> to vector<8x1x128xf32>
    tpu.vector_store %arg11[%c0_12, %c0_13, %c0_14], %20 {strides = array<i32>} : memref<8x8x128xf32, #tpu.memory_space<vmem>>, vector<8x1x128xf32>,
    %21 = vector.extract_strided_slice %10 {offsets = [0, 1, 0], sizes = [8, 1, 128], strides = [1, 1, 1]} : vector<8x8x128xf32> to vector<8x1x128xf32>
    %22 = vector.shape_cast %21 : vector<8x1x128xf32> to vector<8x128xf32>
    %cst_15 = arith.constant dense<0.000000e+00> : vector<8x128xf32>
    %23 = tpu.matmul %17, %11, %cst_15 {dimension_numbers = #tpu.dot_dimension_numbers<[1], [0], [0], [1], [0, 0, 1, 1], [], []>} : vector<8x128xf32>, vector<128x128xf32>, vector<8x128xf32> -> vector<8x128xf32>
    %24 = arith.addf %22, %23 : vector<8x128xf32>
    %25 = math.tanh %24 : vector<8x128xf32>
    %c0_16 = arith.constant 0 : index
    %c1 = arith.constant 1 : index
    %c0_17 = arith.constant 0 : index
    %26 = vector.load %arg11[%c0_16, %c1, %c0_17] : memref<8x8x128xf32, #tpu.memory_space<vmem>>, vector<8x1x128xf32>
    %27 = vector.shape_cast %26 : vector<8x1x128xf32> to vector<8x128xf32>
    %28 = vector.shape_cast %25 : vector<8x128xf32> to vector<8x1x128xf32>
    tpu.vector_store %arg11[%c0_16, %c1, %c0_17], %28 {strides = array<i32>} : memref<8x8x128xf32, #tpu.memory_space<vmem>>, vector<8x1x128xf32>,
    %29 = vector.extract_strided_slice %10 {offsets = [0, 2, 0], sizes = [8, 1, 128], strides = [1, 1, 1]} : vector<8x8x128xf32> to vector<8x1x128xf32>
    %30 = vector.shape_cast %29 : vector<8x1x128xf32> to vector<8x128xf32>
    %cst_18 = arith.constant dense<0.000000e+00> : vector<8x128xf32>
    %31 = tpu.matmul %25, %11, %cst_18 {dimension_numbers = #tpu.dot_dimension_numbers<[1], [0], [0], [1], [0, 0, 1, 1], [], []>} : vector<8x128xf32>, vector<128x128xf32>, vector<8x128xf32> -> vector<8x128xf32>
    %32 = arith.addf %30, %31 : vector<8x128xf32>
    %33 = math.tanh %32 : vector<8x128xf32>
    %c0_19 = arith.constant 0 : index
    %c2 = arith.constant 2 : index
    %c0_20 = arith.constant 0 : index
    %34 = vector.load %arg11[%c0_19, %c2, %c0_20] : memref<8x8x128xf32, #tpu.memory_space<vmem>>, vector<8x1x128xf32>
    %35 = vector.shape_cast %34 : vector<8x1x128xf32> to vector<8x128xf32>
    %36 = vector.shape_cast %33 : vector<8x128xf32> to vector<8x1x128xf32>
    tpu.vector_store %arg11[%c0_19, %c2, %c0_20], %36 {strides = array<i32>} : memref<8x8x128xf32, #tpu.memory_space<vmem>>, vector<8x1x128xf32>,
    %37 = vector.extract_strided_slice %10 {offsets = [0, 3, 0], sizes = [8, 1, 128], strides = [1, 1, 1]} : vector<8x8x128xf32> to vector<8x1x128xf32>
    %38 = vector.shape_cast %37 : vector<8x1x128xf32> to vector<8x128xf32>
    %cst_21 = arith.constant dense<0.000000e+00> : vector<8x128xf32>
    %39 = tpu.matmul %33, %11, %cst_21 {dimension_numbers = #tpu.dot_dimension_numbers<[1], [0], [0], [1], [0, 0, 1, 1], [], []>} : vector<8x128xf32>, vector<128x128xf32>, vector<8x128xf32> -> vector<8x128xf32>
    %40 = arith.addf %38, %39 : vector<8x128xf32>
    %41 = math.tanh %40 : vector<8x128xf32>
    %c0_22 = arith.constant 0 : index
    %c3 = arith.constant 3 : index
    %c0_23 = arith.constant 0 : index
    %42 = vector.load %arg11[%c0_22, %c3, %c0_23] : memref<8x8x128xf32, #tpu.memory_space<vmem>>, vector<8x1x128xf32>
    %43 = vector.shape_cast %42 : vector<8x1x128xf32> to vector<8x128xf32>
    %44 = vector.shape_cast %41 : vector<8x128xf32> to vector<8x1x128xf32>
    tpu.vector_store %arg11[%c0_22, %c3, %c0_23], %44 {strides = array<i32>} : memref<8x8x128xf32, #tpu.memory_space<vmem>>, vector<8x1x128xf32>,
    %45 = vector.extract_strided_slice %10 {offsets = [0, 4, 0], sizes = [8, 1, 128], strides = [1, 1, 1]} : vector<8x8x128xf32> to vector<8x1x128xf32>
    %46 = vector.shape_cast %45 : vector<8x1x128xf32> to vector<8x128xf32>
    %cst_24 = arith.constant dense<0.000000e+00> : vector<8x128xf32>
    %47 = tpu.matmul %41, %11, %cst_24 {dimension_numbers = #tpu.dot_dimension_numbers<[1], [0], [0], [1], [0, 0, 1, 1], [], []>} : vector<8x128xf32>, vector<128x128xf32>, vector<8x128xf32> -> vector<8x128xf32>
    %48 = arith.addf %46, %47 : vector<8x128xf32>
    %49 = math.tanh %48 : vector<8x128xf32>
    %c0_25 = arith.constant 0 : index
    %c4 = arith.constant 4 : index
    %c0_26 = arith.constant 0 : index
    %50 = vector.load %arg11[%c0_25, %c4, %c0_26] : memref<8x8x128xf32, #tpu.memory_space<vmem>>, vector<8x1x128xf32>
    %51 = vector.shape_cast %50 : vector<8x1x128xf32> to vector<8x128xf32>
    %52 = vector.shape_cast %49 : vector<8x128xf32> to vector<8x1x128xf32>
    tpu.vector_store %arg11[%c0_25, %c4, %c0_26], %52 {strides = array<i32>} : memref<8x8x128xf32, #tpu.memory_space<vmem>>, vector<8x1x128xf32>,
    %53 = vector.extract_strided_slice %10 {offsets = [0, 5, 0], sizes = [8, 1, 128], strides = [1, 1, 1]} : vector<8x8x128xf32> to vector<8x1x128xf32>
    %54 = vector.shape_cast %53 : vector<8x1x128xf32> to vector<8x128xf32>
    %cst_27 = arith.constant dense<0.000000e+00> : vector<8x128xf32>
    %55 = tpu.matmul %49, %11, %cst_27 {dimension_numbers = #tpu.dot_dimension_numbers<[1], [0], [0], [1], [0, 0, 1, 1], [], []>} : vector<8x128xf32>, vector<128x128xf32>, vector<8x128xf32> -> vector<8x128xf32>
    %56 = arith.addf %54, %55 : vector<8x128xf32>
    %57 = math.tanh %56 : vector<8x128xf32>
    %c0_28 = arith.constant 0 : index
    %c5 = arith.constant 5 : index
    %c0_29 = arith.constant 0 : index
    %58 = vector.load %arg11[%c0_28, %c5, %c0_29] : memref<8x8x128xf32, #tpu.memory_space<vmem>>, vector<8x1x128xf32>
    %59 = vector.shape_cast %58 : vector<8x1x128xf32> to vector<8x128xf32>
    %60 = vector.shape_cast %57 : vector<8x128xf32> to vector<8x1x128xf32>
    tpu.vector_store %arg11[%c0_28, %c5, %c0_29], %60 {strides = array<i32>} : memref<8x8x128xf32, #tpu.memory_space<vmem>>, vector<8x1x128xf32>,
    %61 = vector.extract_strided_slice %10 {offsets = [0, 6, 0], sizes = [8, 1, 128], strides = [1, 1, 1]} : vector<8x8x128xf32> to vector<8x1x128xf32>
    %62 = vector.shape_cast %61 : vector<8x1x128xf32> to vector<8x128xf32>
    %cst_30 = arith.constant dense<0.000000e+00> : vector<8x128xf32>
    %63 = tpu.matmul %57, %11, %cst_30 {dimension_numbers = #tpu.dot_dimension_numbers<[1], [0], [0], [1], [0, 0, 1, 1], [], []>} : vector<8x128xf32>, vector<128x128xf32>, vector<8x128xf32> -> vector<8x128xf32>
    %64 = arith.addf %62, %63 : vector<8x128xf32>
    %65 = math.tanh %64 : vector<8x128xf32>
    %c0_31 = arith.constant 0 : index
    %c6 = arith.constant 6 : index
    %c0_32 = arith.constant 0 : index
    %66 = vector.load %arg11[%c0_31, %c6, %c0_32] : memref<8x8x128xf32, #tpu.memory_space<vmem>>, vector<8x1x128xf32>
    %67 = vector.shape_cast %66 : vector<8x1x128xf32> to vector<8x128xf32>
    %68 = vector.shape_cast %65 : vector<8x128xf32> to vector<8x1x128xf32>
    tpu.vector_store %arg11[%c0_31, %c6, %c0_32], %68 {strides = array<i32>} : memref<8x8x128xf32, #tpu.memory_space<vmem>>, vector<8x1x128xf32>,
    %69 = vector.extract_strided_slice %10 {offsets = [0, 7, 0], sizes = [8, 1, 128], strides = [1, 1, 1]} : vector<8x8x128xf32> to vector<8x1x128xf32>
    %70 = vector.shape_cast %69 : vector<8x1x128xf32> to vector<8x128xf32>
    %cst_33 = arith.constant dense<0.000000e+00> : vector<8x128xf32>
    %71 = tpu.matmul %65, %11, %cst_33 {dimension_numbers = #tpu.dot_dimension_numbers<[1], [0], [0], [1], [0, 0, 1, 1], [], []>} : vector<8x128xf32>, vector<128x128xf32>, vector<8x128xf32> -> vector<8x128xf32>
    %72 = arith.addf %70, %71 : vector<8x128xf32>
    %73 = math.tanh %72 : vector<8x128xf32>
    %c0_34 = arith.constant 0 : index
    %c7 = arith.constant 7 : index
    %c0_35 = arith.constant 0 : index
    %74 = vector.load %arg11[%c0_34, %c7, %c0_35] : memref<8x8x128xf32, #tpu.memory_space<vmem>>, vector<8x1x128xf32>
    %75 = vector.shape_cast %74 : vector<8x1x128xf32> to vector<8x128xf32>
    %76 = vector.shape_cast %73 : vector<8x128xf32> to vector<8x1x128xf32>
    tpu.vector_store %arg11[%c0_34, %c7, %c0_35], %76 {strides = array<i32>} : memref<8x8x128xf32, #tpu.memory_space<vmem>>, vector<8x1x128xf32>,
    %c0_36 = arith.constant 0 : index
    %c0_37 = arith.constant 0 : index
    %77 = vector.load %arg10[%c0_36, %c0_37] : memref<8x128xf32, #tpu.memory_space<vmem>>, vector<8x128xf32>
    tpu.vector_store %arg10[%c0_36, %c0_37], %73 {strides = array<i32>} : memref<8x128xf32, #tpu.memory_space<vmem>>, vector<8x128xf32>,
    %c0_38 = arith.constant 0 : index
    %c0_39 = arith.constant 0 : index
    %c0_40 = arith.constant 0 : index
    %78 = vector.load %arg11[%c0_38, %c0_39, %c0_40] : memref<8x8x128xf32, #tpu.memory_space<vmem>>, vector<8x8x128xf32>
    %79 = vector.shape_cast %78 : vector<8x8x128xf32> to vector<64x128xf32>
    %c0_41 = arith.constant 0 : index
    %c0_42 = arith.constant 0 : index
    %80 = vector.load %arg6[%c0_41, %c0_42] : memref<128x128xf32, #tpu.memory_space<vmem>>, vector<128x128xf32>
    %cst_43 = arith.constant dense<0.000000e+00> : vector<64x128xf32>
    %81 = tpu.matmul %79, %80, %cst_43 {dimension_numbers = #tpu.dot_dimension_numbers<[1], [0], [0], [1], [0, 0, 1, 1], [], []>} : vector<64x128xf32>, vector<128x128xf32>, vector<64x128xf32> -> vector<64x128xf32>
    %c0_44 = arith.constant 0 : index
    %c0_45 = arith.constant 0 : index
    %82 = vector.load %arg7[%c0_44, %c0_45] : memref<1x128xf32, #tpu.memory_space<vmem>>, vector<1x128xf32>
    %83 = vector.broadcast %82 : vector<1x128xf32> to vector<64x128xf32>
    %84 = arith.addf %81, %83 : vector<64x128xf32>
    %85 = vector.shape_cast %84 : vector<64x128xf32> to vector<8x8x128xf32>
    %c0_46 = arith.constant 0 : index
    %c0_47 = arith.constant 0 : index
    %c0_48 = arith.constant 0 : index
    %86 = vector.load %arg8[%c0_46, %c0_47, %c0_48] : memref<8x8x128xf32, #tpu.memory_space<vmem>>, vector<8x8x128xf32>
    tpu.vector_store %arg8[%c0_46, %c0_47, %c0_48], %85 {strides = array<i32>} : memref<8x8x128xf32, #tpu.memory_space<vmem>>, vector<8x8x128xf32>,
    %c0_i32_49 = arith.constant 0 : i32
    %87 = arith.cmpi eq, %arg0, %c0_i32_49 : i32
    %88 = arith.extui %87 : i1 to i32
    %c0_i32_50 = arith.constant 0 : i32
    %89 = arith.cmpi ne, %88, %c0_i32_50 : i32
    scf.if %89 {
      %c0_51 = arith.constant 0 : index
      %c0_52 = arith.constant 0 : index
      %90 = vector.load %arg9[%c0_51, %c0_52] : memref<8x128xf32, #tpu.memory_space<vmem>>, vector<8x128xf32>
      tpu.vector_store %arg9[%c0_51, %c0_52], %73 {strides = array<i32>} : memref<8x128xf32, #tpu.memory_space<vmem>>, vector<8x128xf32>,
    } else {
    }
    return
  }
  func.func @transform_0(%arg0: i32) -> (i32, i32, i32) {
    %c0_i32 = arith.constant 0 : i32
    %c0_i32_0 = arith.constant 0 : i32
    %c0_i32_1 = arith.constant 0 : i32
    return %c0_i32, %arg0, %c0_i32_0 : i32, i32, i32
  }
  func.func @transform_1(%arg0: i32) -> (i32, i32) {
    %c0_i32 = arith.constant 0 : i32
    %c0_i32_0 = arith.constant 0 : i32
    %c0_i32_1 = arith.constant 0 : i32
    return %c0_i32, %c0_i32_0 : i32, i32
  }
  func.func @transform_2(%arg0: i32) -> (i32, i32) {
    %c0_i32 = arith.constant 0 : i32
    %c0_i32_0 = arith.constant 0 : i32
    %c0_i32_1 = arith.constant 0 : i32
    return %c0_i32, %c0_i32_0 : i32, i32
  }
  func.func @transform_3(%arg0: i32) -> (i32, i32) {
    %c0_i32 = arith.constant 0 : i32
    %c0_i32_0 = arith.constant 0 : i32
    %c0_i32_1 = arith.constant 0 : i32
    return %c0_i32, %c0_i32_0 : i32, i32
  }
  func.func @transform_4(%arg0: i32) -> (i32, i32) {
    %c0_i32 = arith.constant 0 : i32
    %c0_i32_0 = arith.constant 0 : i32
    %c0_i32_1 = arith.constant 0 : i32
    return %c0_i32, %c0_i32_0 : i32, i32
  }
  func.func @transform_5(%arg0: i32) -> (i32, i32) {
    %c0_i32 = arith.constant 0 : i32
    %c0_i32_0 = arith.constant 0 : i32
    %c0_i32_1 = arith.constant 0 : i32
    return %c0_i32, %c0_i32_0 : i32, i32
  }
  func.func @transform_6(%arg0: i32) -> (i32, i32) {
    %c0_i32 = arith.constant 0 : i32
    %c0_i32_0 = arith.constant 0 : i32
    %c0_i32_1 = arith.constant 0 : i32
    return %c0_i32, %c0_i32_0 : i32, i32
  }
  func.func @transform_7(%arg0: i32) -> (i32, i32, i32) {
    %c0_i32 = arith.constant 0 : i32
    %c0_i32_0 = arith.constant 0 : i32
    %c0_i32_1 = arith.constant 0 : i32
    return %c0_i32, %arg0, %c0_i32_0 : i32, i32, i32
  }
  func.func @transform_8(%arg0: i32) -> (i32, i32) {
    %c0_i32 = arith.constant 0 : i32
    %c0_i32_0 = arith.constant 0 : i32
    %c0_i32_1 = arith.constant 0 : i32
    return %c0_i32, %c0_i32_0 : i32, i32
  }
}

</mosaic_0001>

<llo_original>
// kernel: rnn_forward.1
$region0: #{rnn_forward.1}
  #allocation0 [shape = 'u32[]', space=smem, size = 0x4, offset = 0x4, fixed_abs, tag = 'smem constant byte address 0x4 - core index']
  #allocation1 [shape = 'u32[72,128]{1,0:T(1,128)}', space=vmem, size = 0x9000, scoped, tag = 'internal scratch']
  #allocation2 [shape = 'f32[8,128]{1,0:T(8,128)}', space=vmem, size = 0x1000, scoped, tag = 'scratch operand']
  #allocation3 [shape = 'f32[8,8,128]{2,1,0:T(8,128)}', space=vmem, size = 0x8000, scoped, tag = 'scratch operand']
  %s0 = inlined_call_operand.vmem [shape: f32[8,8,128], index: 0, kind: input, shape index: {}]
  %s1 = inlined_call_operand.vmem [shape: f32[8,128], index: 1, kind: input, shape index: {}]
  %s2 = inlined_call_operand.vmem [shape: f32[128,128], index: 2, kind: input, shape index: {}]
  %s3 = inlined_call_operand.vmem [shape: f32[128,128], index: 3, kind: input, shape index: {}]
  %s4 = inlined_call_operand.vmem [shape: f32[1,128], index: 4, kind: input, shape index: {}]
  %s5 = inlined_call_operand.vmem [shape: f32[128,128], index: 5, kind: input, shape index: {}]
  %s6 = inlined_call_operand.vmem [shape: f32[1,128], index: 6, kind: input, shape index: {}]
  %s7 = inlined_call_operand.vmem [shape: f32[8,8,128], index: 7, kind: output, shape index: {0}]
  %s8 = inlined_call_operand.vmem [shape: f32[8,128], index: 8, kind: output, shape index: {1}]
  %9 = xla_tuple %s7, %s8
  %s10 = sld [smem:[#allocation0]]
  $region54: #{rnn_forward.1} parent=0
    _
  %s12 = ssub.s32 1, %s10
  %s13 = scalar_select 0, %s12, %s10
  // Predicated region
  $region2: #{rnn_forward.1} parent=0 // pred_check
    _
  $region3: #{rnn_forward.1} parent=0 // pred_check_branch
    %15 = sbr.rel (0) target = $region5
  $region4: #{rnn_forward.1} parent=0 // pred_region
    _
  $region5: #{rnn_forward.1} parent=0 // pred_fallthru
    _
  // Predicated region
  $region6: #{rnn_forward.1} parent=0 // pred_check
    _
  $region7: #{rnn_forward.1} parent=0 // pred_check_branch
    %17 = sbr.rel (0) target = $region9
  $region8: #{rnn_forward.1} parent=0 // pred_region
    _
  $region9: #{rnn_forward.1} parent=0 // pred_fallthru
    _
  // Predicated region
  $region10: #{rnn_forward.1} parent=0 // pred_check
    _
  $region11: #{rnn_forward.1} parent=0 // pred_check_branch
    %19 = sbr.rel (0) target = $region13
  $region12: #{rnn_forward.1} parent=0 // pred_region
    _
  $region13: #{rnn_forward.1} parent=0 // pred_fallthru
    _
  // Predicated region
  $region14: #{rnn_forward.1} parent=0 // pred_check
    _
  $region15: #{rnn_forward.1} parent=0 // pred_check_branch
    %21 = sbr.rel (0) target = $region17
  $region16: #{rnn_forward.1} parent=0 // pred_region
    _
  $region17: #{rnn_forward.1} parent=0 // pred_fallthru
    _
  // Predicated region
  $region18: #{rnn_forward.1} parent=0 // pred_check
    _
  $region19: #{rnn_forward.1} parent=0 // pred_check_branch
    %23 = sbr.rel (0) target = $region21
  $region20: #{rnn_forward.1} parent=0 // pred_region
    _
  $region21: #{rnn_forward.1} parent=0 // pred_fallthru
    _
  // Predicated region
  $region22: #{rnn_forward.1} parent=0 // pred_check
    _
  $region23: #{rnn_forward.1} parent=0 // pred_check_branch
    %25 = sbr.rel (0) target = $region25
  $region24: #{rnn_forward.1} parent=0 // pred_region
    _
  $region25: #{rnn_forward.1} parent=0 // pred_fallthru
    _
  // Predicated region
  $region26: #{rnn_forward.1} parent=0 // pred_check
    _
  $region27: #{rnn_forward.1} parent=0 // pred_check_branch
    %27 = sbr.rel (0) target = $region29
  $region28: #{rnn_forward.1} parent=0 // pred_region
    _
  $region29: #{rnn_forward.1} parent=0 // pred_fallthru
    _
  %p28 = scmp.eq.s32.totalorder 0, 0
  // Predicated region
  $region30: #{rnn_forward.1} parent=0 // pred_check
    %p29 = pneg %p28
  $region31: #{rnn_forward.1} parent=0 // pred_check_branch
    %31 = sbr.rel (%p29) target = $region33
  $region32: #{rnn_forward.1} parent=0 // pred_region
    %v32 = vld [vmem:[%s1] sm:$0xff]
    %33 = vst [vmem:[#allocation2] sm:$0xff] %v32
  $region33: #{rnn_forward.1} parent=0 // pred_fallthru
    _
  %v34 = vld [vmem:[%s0] sm:$0xff]
  %v35 = vld [vmem:[%s0 + $0x8] sm:$0xff]
  %v36 = vld [vmem:[%s0 + $0x10] sm:$0xff]
  %v37 = vld [vmem:[%s0 + $0x18] sm:$0xff]
  %v38 = vld [vmem:[%s0 + $0x20] sm:$0xff]
  %v39 = vld [vmem:[%s0 + $0x28] sm:$0xff]
  %v40 = vld [vmem:[%s0 + $0x30] sm:$0xff]
  %v41 = vld [vmem:[%s0 + $0x38] sm:$0xff]
  %v42 = vld [vmem:[%s2] sm:$0xff]
  %v43 = vld [vmem:[%s2 + $0x8] sm:$0xff]
  %v44 = vld [vmem:[%s2 + $0x10] sm:$0xff]
  %v45 = vld [vmem:[%s2 + $0x18] sm:$0xff]
  %v46 = vld [vmem:[%s2 + $0x20] sm:$0xff]
  %v47 = vld [vmem:[%s2 + $0x28] sm:$0xff]
  %v48 = vld [vmem:[%s2 + $0x30] sm:$0xff]
  %v49 = vld [vmem:[%s2 + $0x38] sm:$0xff]
  %v50 = vld [vmem:[%s2 + $0x40] sm:$0xff]
  %v51 = vld [vmem:[%s2 + $0x48] sm:$0xff]
  %v52 = vld [vmem:[%s2 + $0x50] sm:$0xff]
  %v53 = vld [vmem:[%s2 + $0x58] sm:$0xff]
  %v54 = vld [vmem:[%s2 + $0x60] sm:$0xff]
  %v55 = vld [vmem:[%s2 + $0x68] sm:$0xff]
  %v56 = vld [vmem:[%s2 + $0x70] sm:$0xff]
  %v57 = vld [vmem:[%s2 + $0x78] sm:$0xff]
  %v58 = vld [vmem:[%s4] sm:$0x1]
  %v60 = vperm.slane %v58, 0
  %62 = vmatpush.msra.mxu0 %v57
  %63 = vmatpush.msra.mxu0 %v56
  %64 = vmatpush.msra.mxu0 %v55
  %65 = vmatpush.msra.mxu0 %v54
  %66 = vmatpush.msra.mxu0 %v53
  %67 = vmatpush.msra.mxu0 %v52
  %68 = vmatpush.msra.mxu0 %v51
  %69 = vmatpush.msra.mxu0 %v50
  %70 = vmatpush.msra.mxu0 %v49
  %71 = vmatpush.msra.mxu0 %v48
  %72 = vmatpush.msra.mxu0 %v47
  %73 = vmatpush.msra.mxu0 %v46
  %74 = vmatpush.msra.mxu0 %v45
  %75 = vmatpush.msra.mxu0 %v44
  %76 = vmatpush.msra.mxu0 %v43
  %77 = vmatpush.msra.mxu0 %v42
  %78 = vmatmul.f32.gmra.mxu0 %v34
  %v79 = vpop.f32.mrf.mxu0
  %v80 = vadd.f32 %v60, %v79
  %81 = vmatmul.f32.gmra.mxu0 %v35
  %v82 = vpop.f32.mrf.mxu0
  %v83 = vadd.f32 %v60, %v82
  %84 = vmatmul.f32.gmra.mxu0 %v36
  %v85 = vpop.f32.mrf.mxu0
  %v86 = vadd.f32 %v60, %v85
  %87 = vmatmul.f32.gmra.mxu0 %v37
  %v88 = vpop.f32.mrf.mxu0
  %v89 = vadd.f32 %v60, %v88
  %90 = vmatmul.f32.gmra.mxu0 %v38
  %v91 = vpop.f32.mrf.mxu0
  %v92 = vadd.f32 %v60, %v91
  %93 = vmatmul.f32.gmra.mxu0 %v39
  %v94 = vpop.f32.mrf.mxu0
  %v95 = vadd.f32 %v60, %v94
  %96 = vmatmul.f32.gmra.mxu0 %v40
  %v97 = vpop.f32.mrf.mxu0
  %v98 = vadd.f32 %v60, %v97
  %99 = vmatmul.f32.gmra.mxu0 %v41
  %v100 = vpop.f32.mrf.mxu0
  %v101 = vadd.f32 %v60, %v100
  %102 = vdwg.mxu0
  %v103 = vld [vmem:[%s3] sm:$0xff]
  %v104 = vld [vmem:[%s3 + $0x8] sm:$0xff]
  %v105 = vld [vmem:[%s3 + $0x10] sm:$0xff]
  %v106 = vld [vmem:[%s3 + $0x18] sm:$0xff]
  %v107 = vld [vmem:[%s3 + $0x20] sm:$0xff]
  %v108 = vld [vmem:[%s3 + $0x28] sm:$0xff]
  %v109 = vld [vmem:[%s3 + $0x30] sm:$0xff]
  %v110 = vld [vmem:[%s3 + $0x38] sm:$0xff]
  %v111 = vld [vmem:[%s3 + $0x40] sm:$0xff]
  %v112 = vld [vmem:[%s3 + $0x48] sm:$0xff]
  %v113 = vld [vmem:[%s3 + $0x50] sm:$0xff]
  %v114 = vld [vmem:[%s3 + $0x58] sm:$0xff]
  %v115 = vld [vmem:[%s3 + $0x60] sm:$0xff]
  %v116 = vld [vmem:[%s3 + $0x68] sm:$0xff]
  %v117 = vld [vmem:[%s3 + $0x70] sm:$0xff]
  %v118 = vld [vmem:[%s3 + $0x78] sm:$0xff]
  %v119 = vld [vmem:[#allocation2] sm:$0xff]
  %120 = vmatpush.msra.mxu0 %v118
  %121 = vmatpush.msra.mxu0 %v117
  %122 = vmatpush.msra.mxu0 %v116
  %123 = vmatpush.msra.mxu0 %v115
  %124 = vmatpush.msra.mxu0 %v114
  %125 = vmatpush.msra.mxu0 %v113
  %126 = vmatpush.msra.mxu0 %v112
  %127 = vmatpush.msra.mxu0 %v111
  %128 = vmatpush.msra.mxu0 %v110
  %129 = vmatpush.msra.mxu0 %v109
  %130 = vmatpush.msra.mxu0 %v108
  %131 = vmatpush.msra.mxu0 %v107
  %132 = vmatpush.msra.mxu0 %v106
  %133 = vmatpush.msra.mxu0 %v105
  %134 = vmatpush.msra.mxu0 %v104
  %135 = vmatpush.msra.mxu0 %v103
  %136 = vmatmul.f32.gmra.mxu0 %v119
  %v137 = vpop.f32.mrf.mxu0
  %v138 = vadd.f32 0.0, %v137
  %139 = vdwg.mxu0
  %v141 = vrot.slane %v138, 1
  %v142 = vrot.slane %v138, 2
  %v143 = vrot.slane %v138, 3
  %v144 = vrot.slane %v138, 4
  %v145 = vrot.slane %v138, 5
  %v146 = vrot.slane %v138, 6
  %v147 = vrot.slane %v138, 7
  %v156 = vadd.f32 %v80, %v138
  %v157 = vadd.f32 %v83, %v141
  %v158 = vadd.f32 %v86, %v142
  %v159 = vadd.f32 %v89, %v143
  %v160 = vadd.f32 %v92, %v144
  %v161 = vadd.f32 %v95, %v145
  %v162 = vadd.f32 %v98, %v146
  %v163 = vadd.f32 %v101, %v147
  %v164 = vtanh.pop %v156
  %v165 = vtanh.pop %v157
  %v166 = vtanh.pop %v158
  %v167 = vtanh.pop %v159
  %v168 = vtanh.pop %v160
  %v169 = vtanh.pop %v161
  %v170 = vtanh.pop %v162
  %v171 = vtanh.pop %v163
  %172 = vst [vmem:[#allocation3] sm:$0x1] %v164
  %173 = vst [vmem:[#allocation3 + $0x8] sm:$0x1] %v165
  %174 = vst [vmem:[#allocation3 + $0x10] sm:$0x1] %v166
  %175 = vst [vmem:[#allocation3 + $0x18] sm:$0x1] %v167
  %176 = vst [vmem:[#allocation3 + $0x20] sm:$0x1] %v168
  %177 = vst [vmem:[#allocation3 + $0x28] sm:$0x1] %v169
  %178 = vst [vmem:[#allocation3 + $0x30] sm:$0x1] %v170
  %179 = vst [vmem:[#allocation3 + $0x38] sm:$0x1] %v171
  %v188 = vrot.slane %v165, 7
  %vm189 = vcmask 1041409
  %v190 = vsel %vm189, %v188, %v164
  %v191 = vrot.slane %v166, 6
  %vm192 = vcmask 1042434
  %v193 = vsel %vm192, %v191, %v190
  %v194 = vrot.slane %v167, 5
  %vm195 = vcmask 1043459
  %v196 = vsel %vm195, %v194, %v193
  %v197 = vrot.slane %v168, 4
  %vm198 = vcmask 1044484
  %v199 = vsel %vm198, %v197, %v196
  %v200 = vrot.slane %v169, 3
  %vm201 = vcmask 1045509
  %v202 = vsel %vm201, %v200, %v199
  %v203 = vrot.slane %v170, 2
  %vm204 = vcmask 1046534
  %v205 = vsel %vm204, %v203, %v202
  %v206 = vrot.slane %v171, 1
  %vm207 = vcmask 1047559
  %v208 = vsel %vm207, %v206, %v205
  %210 = vmatpush.msra.mxu0 %v118
  %211 = vmatpush.msra.mxu0 %v117
  %212 = vmatpush.msra.mxu0 %v116
  %213 = vmatpush.msra.mxu0 %v115
  %214 = vmatpush.msra.mxu0 %v114
  %215 = vmatpush.msra.mxu0 %v113
  %216 = vmatpush.msra.mxu0 %v112
  %217 = vmatpush.msra.mxu0 %v111
  %218 = vmatpush.msra.mxu0 %v110
  %219 = vmatpush.msra.mxu0 %v109
  %220 = vmatpush.msra.mxu0 %v108
  %221 = vmatpush.msra.mxu0 %v107
  %222 = vmatpush.msra.mxu0 %v106
  %223 = vmatpush.msra.mxu0 %v105
  %224 = vmatpush.msra.mxu0 %v104
  %225 = vmatpush.msra.mxu0 %v103
  %226 = vmatmul.f32.gmra.mxu0 %v208
  %v227 = vpop.f32.mrf.mxu0
  %v228 = vadd.f32 0.0, %v227
  %229 = vdwg.mxu0
  %v231 = vrot.slane %v228, 7
  %v232 = vrot.slane %v228, 1
  %v233 = vrot.slane %v228, 2
  %v234 = vrot.slane %v228, 3
  %v235 = vrot.slane %v228, 4
  %v236 = vrot.slane %v228, 5
  %v237 = vrot.slane %v228, 6
  %v246 = vadd.f32 %v80, %v231
  %v247 = vadd.f32 %v83, %v228
  %v248 = vadd.f32 %v86, %v232
  %v249 = vadd.f32 %v89, %v233
  %v250 = vadd.f32 %v92, %v234
  %v251 = vadd.f32 %v95, %v235
  %v252 = vadd.f32 %v98, %v236
  %v253 = vadd.f32 %v101, %v237
  %v254 = vtanh.pop %v246
  %v255 = vtanh.pop %v247
  %v256 = vtanh.pop %v248
  %v257 = vtanh.pop %v249
  %v258 = vtanh.pop %v250
  %v259 = vtanh.pop %v251
  %v260 = vtanh.pop %v252
  %v261 = vtanh.pop %v253
  %262 = vst [vmem:[#allocation3] sm:$0x2] %v254
  %263 = vst [vmem:[#allocation3 + $0x8] sm:$0x2] %v255
  %264 = vst [vmem:[#allocation3 + $0x10] sm:$0x2] %v256
  %265 = vst [vmem:[#allocation3 + $0x18] sm:$0x2] %v257
  %266 = vst [vmem:[#allocation3 + $0x20] sm:$0x2] %v258
  %267 = vst [vmem:[#allocation3 + $0x28] sm:$0x2] %v259
  %268 = vst [vmem:[#allocation3 + $0x30] sm:$0x2] %v260
  %269 = vst [vmem:[#allocation3 + $0x38] sm:$0x2] %v261
  %v278 = vrot.slane %v254, 1
  %v279 = vsel %vm189, %v255, %v278
  %v280 = vrot.slane %v256, 7
  %v281 = vsel %vm192, %v280, %v279
  %v282 = vrot.slane %v257, 6
  %v283 = vsel %vm195, %v282, %v281
  %v284 = vrot.slane %v258, 5
  %v285 = vsel %vm198, %v284, %v283
  %v286 = vrot.slane %v259, 4
  %v287 = vsel %vm201, %v286, %v285
  %v288 = vrot.slane %v260, 3
  %v289 = vsel %vm204, %v288, %v287
  %v290 = vrot.slane %v261, 2
  %v291 = vsel %vm207, %v290, %v289
  %293 = vmatpush.msra.mxu0 %v118
  %294 = vmatpush.msra.mxu0 %v117
  %295 = vmatpush.msra.mxu0 %v116
  %296 = vmatpush.msra.mxu0 %v115
  %297 = vmatpush.msra.mxu0 %v114
  %298 = vmatpush.msra.mxu0 %v113
  %299 = vmatpush.msra.mxu0 %v112
  %300 = vmatpush.msra.mxu0 %v111
  %301 = vmatpush.msra.mxu0 %v110
  %302 = vmatpush.msra.mxu0 %v109
  %303 = vmatpush.msra.mxu0 %v108
  %304 = vmatpush.msra.mxu0 %v107
  %305 = vmatpush.msra.mxu0 %v106
  %306 = vmatpush.msra.mxu0 %v105
  %307 = vmatpush.msra.mxu0 %v104
  %308 = vmatpush.msra.mxu0 %v103
  %309 = vmatmul.f32.gmra.mxu0 %v291
  %v310 = vpop.f32.mrf.mxu0
  %v311 = vadd.f32 0.0, %v310
  %312 = vdwg.mxu0
  %v314 = vrot.slane %v311, 6
  %v315 = vrot.slane %v311, 7
  %v316 = vrot.slane %v311, 1
  %v317 = vrot.slane %v311, 2
  %v318 = vrot.slane %v311, 3
  %v319 = vrot.slane %v311, 4
  %v320 = vrot.slane %v311, 5
  %v329 = vadd.f32 %v80, %v314
  %v330 = vadd.f32 %v83, %v315
  %v331 = vadd.f32 %v86, %v311
  %v332 = vadd.f32 %v89, %v316
  %v333 = vadd.f32 %v92, %v317
  %v334 = vadd.f32 %v95, %v318
  %v335 = vadd.f32 %v98, %v319
  %v336 = vadd.f32 %v101, %v320
  %v337 = vtanh.pop %v329
  %v338 = vtanh.pop %v330
  %v339 = vtanh.pop %v331
  %v340 = vtanh.pop %v332
  %v341 = vtanh.pop %v333
  %v342 = vtanh.pop %v334
  %v343 = vtanh.pop %v335
  %v344 = vtanh.pop %v336
  %345 = vst [vmem:[#allocation3] sm:$0x4] %v337
  %346 = vst [vmem:[#allocation3 + $0x8] sm:$0x4] %v338
  %347 = vst [vmem:[#allocation3 + $0x10] sm:$0x4] %v339
  %348 = vst [vmem:[#allocation3 + $0x18] sm:$0x4] %v340
  %349 = vst [vmem:[#allocation3 + $0x20] sm:$0x4] %v341
  %350 = vst [vmem:[#allocation3 + $0x28] sm:$0x4] %v342
  %351 = vst [vmem:[#allocation3 + $0x30] sm:$0x4] %v343
  %352 = vst [vmem:[#allocation3 + $0x38] sm:$0x4] %v344
  %v361 = vrot.slane %v337, 2
  %v362 = vrot.slane %v338, 1
  %v363 = vsel %vm189, %v362, %v361
  %v364 = vsel %vm192, %v339, %v363
  %v365 = vrot.slane %v340, 7
  %v366 = vsel %vm195, %v365, %v364
  %v367 = vrot.slane %v341, 6
  %v368 = vsel %vm198, %v367, %v366
  %v369 = vrot.slane %v342, 5
  %v370 = vsel %vm201, %v369, %v368
  %v371 = vrot.slane %v343, 4
  %v372 = vsel %vm204, %v371, %v370
  %v373 = vrot.slane %v344, 3
  %v374 = vsel %vm207, %v373, %v372
  %376 = vmatpush.msra.mxu0 %v118
  %377 = vmatpush.msra.mxu0 %v117
  %378 = vmatpush.msra.mxu0 %v116
  %379 = vmatpush.msra.mxu0 %v115
  %380 = vmatpush.msra.mxu0 %v114
  %381 = vmatpush.msra.mxu0 %v113
  %382 = vmatpush.msra.mxu0 %v112
  %383 = vmatpush.msra.mxu0 %v111
  %384 = vmatpush.msra.mxu0 %v110
  %385 = vmatpush.msra.mxu0 %v109
  %386 = vmatpush.msra.mxu0 %v108
  %387 = vmatpush.msra.mxu0 %v107
  %388 = vmatpush.msra.mxu0 %v106
  %389 = vmatpush.msra.mxu0 %v105
  %390 = vmatpush.msra.mxu0 %v104
  %391 = vmatpush.msra.mxu0 %v103
  %392 = vmatmul.f32.gmra.mxu0 %v374
  %v393 = vpop.f32.mrf.mxu0
  %v394 = vadd.f32 0.0, %v393
  %395 = vdwg.mxu0
  %v397 = vrot.slane %v394, 5
  %v398 = vrot.slane %v394, 6
  %v399 = vrot.slane %v394, 7
  %v400 = vrot.slane %v394, 1
  %v401 = vrot.slane %v394, 2
  %v402 = vrot.slane %v394, 3
  %v403 = vrot.slane %v394, 4
  %v412 = vadd.f32 %v80, %v397
  %v413 = vadd.f32 %v83, %v398
  %v414 = vadd.f32 %v86, %v399
  %v415 = vadd.f32 %v89, %v394
  %v416 = vadd.f32 %v92, %v400
  %v417 = vadd.f32 %v95, %v401
  %v418 = vadd.f32 %v98, %v402
  %v419 = vadd.f32 %v101, %v403
  %v420 = vtanh.pop %v412
  %v421 = vtanh.pop %v413
  %v422 = vtanh.pop %v414
  %v423 = vtanh.pop %v415
  %v424 = vtanh.pop %v416
  %v425 = vtanh.pop %v417
  %v426 = vtanh.pop %v418
  %v427 = vtanh.pop %v419
  %428 = vst [vmem:[#allocation3] sm:$0x8] %v420
  %429 = vst [vmem:[#allocation3 + $0x8] sm:$0x8] %v421
  %430 = vst [vmem:[#allocation3 + $0x10] sm:$0x8] %v422
  %431 = vst [vmem:[#allocation3 + $0x18] sm:$0x8] %v423
  %432 = vst [vmem:[#allocation3 + $0x20] sm:$0x8] %v424
  %433 = vst [vmem:[#allocation3 + $0x28] sm:$0x8] %v425
  %434 = vst [vmem:[#allocation3 + $0x30] sm:$0x8] %v426
  %435 = vst [vmem:[#allocation3 + $0x38] sm:$0x8] %v427
  %v444 = vrot.slane %v420, 3
  %v445 = vrot.slane %v421, 2
  %v446 = vsel %vm189, %v445, %v444
  %v447 = vrot.slane %v422, 1
  %v448 = vsel %vm192, %v447, %v446
  %v449 = vsel %vm195, %v423, %v448
  %v450 = vrot.slane %v424, 7
  %v451 = vsel %vm198, %v450, %v449
  %v452 = vrot.slane %v425, 6
  %v453 = vsel %vm201, %v452, %v451
  %v454 = vrot.slane %v426, 5
  %v455 = vsel %vm204, %v454, %v453
  %v456 = vrot.slane %v427, 4
  %v457 = vsel %vm207, %v456, %v455
  %459 = vmatpush.msra.mxu0 %v118
  %460 = vmatpush.msra.mxu0 %v117
  %461 = vmatpush.msra.mxu0 %v116
  %462 = vmatpush.msra.mxu0 %v115
  %463 = vmatpush.msra.mxu0 %v114
  %464 = vmatpush.msra.mxu0 %v113
  %465 = vmatpush.msra.mxu0 %v112
  %466 = vmatpush.msra.mxu0 %v111
  %467 = vmatpush.msra.mxu0 %v110
  %468 = vmatpush.msra.mxu0 %v109
  %469 = vmatpush.msra.mxu0 %v108
  %470 = vmatpush.msra.mxu0 %v107
  %471 = vmatpush.msra.mxu0 %v106
  %472 = vmatpush.msra.mxu0 %v105
  %473 = vmatpush.msra.mxu0 %v104
  %474 = vmatpush.msra.mxu0 %v103
  %475 = vmatmul.f32.gmra.mxu0 %v457
  %v476 = vpop.f32.mrf.mxu0
  %v477 = vadd.f32 0.0, %v476
  %478 = vdwg.mxu0
  %v480 = vrot.slane %v477, 4
  %v481 = vrot.slane %v477, 5
  %v482 = vrot.slane %v477, 6
  %v483 = vrot.slane %v477, 7
  %v484 = vrot.slane %v477, 1
  %v485 = vrot.slane %v477, 2
  %v486 = vrot.slane %v477, 3
  %v495 = vadd.f32 %v80, %v480
  %v496 = vadd.f32 %v83, %v481
  %v497 = vadd.f32 %v86, %v482
  %v498 = vadd.f32 %v89, %v483
  %v499 = vadd.f32 %v92, %v477
  %v500 = vadd.f32 %v95, %v484
  %v501 = vadd.f32 %v98, %v485
  %v502 = vadd.f32 %v101, %v486
  %v503 = vtanh.pop %v495
  %v504 = vtanh.pop %v496
  %v505 = vtanh.pop %v497
  %v506 = vtanh.pop %v498
  %v507 = vtanh.pop %v499
  %v508 = vtanh.pop %v500
  %v509 = vtanh.pop %v501
  %v510 = vtanh.pop %v502
  %511 = vst [vmem:[#allocation3] sm:$0x10] %v503
  %512 = vst [vmem:[#allocation3 + $0x8] sm:$0x10] %v504
  %513 = vst [vmem:[#allocation3 + $0x10] sm:$0x10] %v505
  %514 = vst [vmem:[#allocation3 + $0x18] sm:$0x10] %v506
  %515 = vst [vmem:[#allocation3 + $0x20] sm:$0x10] %v507
  %516 = vst [vmem:[#allocation3 + $0x28] sm:$0x10] %v508
  %517 = vst [vmem:[#allocation3 + $0x30] sm:$0x10] %v509
  %518 = vst [vmem:[#allocation3 + $0x38] sm:$0x10] %v510
  %v527 = vrot.slane %v503, 4
  %v528 = vrot.slane %v504, 3
  %v529 = vsel %vm189, %v528, %v527
  %v530 = vrot.slane %v505, 2
  %v531 = vsel %vm192, %v530, %v529
  %v532 = vrot.slane %v506, 1
  %v533 = vsel %vm195, %v532, %v531
  %v534 = vsel %vm198, %v507, %v533
  %v535 = vrot.slane %v508, 7
  %v536 = vsel %vm201, %v535, %v534
  %v537 = vrot.slane %v509, 6
  %v538 = vsel %vm204, %v537, %v536
  %v539 = vrot.slane %v510, 5
  %v540 = vsel %vm207, %v539, %v538
  %542 = vmatpush.msra.mxu0 %v118
  %543 = vmatpush.msra.mxu0 %v117
  %544 = vmatpush.msra.mxu0 %v116
  %545 = vmatpush.msra.mxu0 %v115
  %546 = vmatpush.msra.mxu0 %v114
  %547 = vmatpush.msra.mxu0 %v113
  %548 = vmatpush.msra.mxu0 %v112
  %549 = vmatpush.msra.mxu0 %v111
  %550 = vmatpush.msra.mxu0 %v110
  %551 = vmatpush.msra.mxu0 %v109
  %552 = vmatpush.msra.mxu0 %v108
  %553 = vmatpush.msra.mxu0 %v107
  %554 = vmatpush.msra.mxu0 %v106
  %555 = vmatpush.msra.mxu0 %v105
  %556 = vmatpush.msra.mxu0 %v104
  %557 = vmatpush.msra.mxu0 %v103
  %558 = vmatmul.f32.gmra.mxu0 %v540
  %v559 = vpop.f32.mrf.mxu0
  %v560 = vadd.f32 0.0, %v559
  %561 = vdwg.mxu0
  %v563 = vrot.slane %v560, 3
  %v564 = vrot.slane %v560, 4
  %v565 = vrot.slane %v560, 5
  %v566 = vrot.slane %v560, 6
  %v567 = vrot.slane %v560, 7
  %v568 = vrot.slane %v560, 1
  %v569 = vrot.slane %v560, 2
  %v578 = vadd.f32 %v80, %v563
  %v579 = vadd.f32 %v83, %v564
  %v580 = vadd.f32 %v86, %v565
  %v581 = vadd.f32 %v89, %v566
  %v582 = vadd.f32 %v92, %v567
  %v583 = vadd.f32 %v95, %v560
  %v584 = vadd.f32 %v98, %v568
  %v585 = vadd.f32 %v101, %v569
  %v586 = vtanh.pop %v578
  %v587 = vtanh.pop %v579
  %v588 = vtanh.pop %v580
  %v589 = vtanh.pop %v581
  %v590 = vtanh.pop %v582
  %v591 = vtanh.pop %v583
  %v592 = vtanh.pop %v584
  %v593 = vtanh.pop %v585
  %594 = vst [vmem:[#allocation3] sm:$0x20] %v586
  %595 = vst [vmem:[#allocation3 + $0x8] sm:$0x20] %v587
  %596 = vst [vmem:[#allocation3 + $0x10] sm:$0x20] %v588
  %597 = vst [vmem:[#allocation3 + $0x18] sm:$0x20] %v589
  %598 = vst [vmem:[#allocation3 + $0x20] sm:$0x20] %v590
  %599 = vst [vmem:[#allocation3 + $0x28] sm:$0x20] %v591
  %600 = vst [vmem:[#allocation3 + $0x30] sm:$0x20] %v592
  %601 = vst [vmem:[#allocation3 + $0x38] sm:$0x20] %v593
  %v610 = vrot.slane %v586, 5
  %v611 = vrot.slane %v587, 4
  %v612 = vsel %vm189, %v611, %v610
  %v613 = vrot.slane %v588, 3
  %v614 = vsel %vm192, %v613, %v612
  %v615 = vrot.slane %v589, 2
  %v616 = vsel %vm195, %v615, %v614
  %v617 = vrot.slane %v590, 1
  %v618 = vsel %vm198, %v617, %v616
  %v619 = vsel %vm201, %v591, %v618
  %v620 = vrot.slane %v592, 7
  %v621 = vsel %vm204, %v620, %v619
  %v622 = vrot.slane %v593, 6
  %v623 = vsel %vm207, %v622, %v621
  %625 = vmatpush.msra.mxu0 %v118
  %626 = vmatpush.msra.mxu0 %v117
  %627 = vmatpush.msra.mxu0 %v116
  %628 = vmatpush.msra.mxu0 %v115
  %629 = vmatpush.msra.mxu0 %v114
  %630 = vmatpush.msra.mxu0 %v113
  %631 = vmatpush.msra.mxu0 %v112
  %632 = vmatpush.msra.mxu0 %v111
  %633 = vmatpush.msra.mxu0 %v110
  %634 = vmatpush.msra.mxu0 %v109
  %635 = vmatpush.msra.mxu0 %v108
  %636 = vmatpush.msra.mxu0 %v107
  %637 = vmatpush.msra.mxu0 %v106
  %638 = vmatpush.msra.mxu0 %v105
  %639 = vmatpush.msra.mxu0 %v104
  %640 = vmatpush.msra.mxu0 %v103
  %641 = vmatmul.f32.gmra.mxu0 %v623
  %v642 = vpop.f32.mrf.mxu0
  %v643 = vadd.f32 0.0, %v642
  %644 = vdwg.mxu0
  %v646 = vrot.slane %v643, 2
  %v647 = vrot.slane %v643, 3
  %v648 = vrot.slane %v643, 4
  %v649 = vrot.slane %v643, 5
  %v650 = vrot.slane %v643, 6
  %v651 = vrot.slane %v643, 7
  %v652 = vrot.slane %v643, 1
  %v661 = vadd.f32 %v80, %v646
  %v662 = vadd.f32 %v83, %v647
  %v663 = vadd.f32 %v86, %v648
  %v664 = vadd.f32 %v89, %v649
  %v665 = vadd.f32 %v92, %v650
  %v666 = vadd.f32 %v95, %v651
  %v667 = vadd.f32 %v98, %v643
  %v668 = vadd.f32 %v101, %v652
  %v669 = vtanh.pop %v661
  %v670 = vtanh.pop %v662
  %v671 = vtanh.pop %v663
  %v672 = vtanh.pop %v664
  %v673 = vtanh.pop %v665
  %v674 = vtanh.pop %v666
  %v675 = vtanh.pop %v667
  %v676 = vtanh.pop %v668
  %677 = vst [vmem:[#allocation3] sm:$0x40] %v669
  %678 = vst [vmem:[#allocation3 + $0x8] sm:$0x40] %v670
  %679 = vst [vmem:[#allocation3 + $0x10] sm:$0x40] %v671
  %680 = vst [vmem:[#allocation3 + $0x18] sm:$0x40] %v672
  %681 = vst [vmem:[#allocation3 + $0x20] sm:$0x40] %v673
  %682 = vst [vmem:[#allocation3 + $0x28] sm:$0x40] %v674
  %683 = vst [vmem:[#allocation3 + $0x30] sm:$0x40] %v675
  %684 = vst [vmem:[#allocation3 + $0x38] sm:$0x40] %v676
  %v693 = vrot.slane %v669, 6
  %v694 = vrot.slane %v670, 5
  %v695 = vsel %vm189, %v694, %v693
  %v696 = vrot.slane %v671, 4
  %v697 = vsel %vm192, %v696, %v695
  %v698 = vrot.slane %v672, 3
  %v699 = vsel %vm195, %v698, %v697
  %v700 = vrot.slane %v673, 2
  %v701 = vsel %vm198, %v700, %v699
  %v702 = vrot.slane %v674, 1
  %v703 = vsel %vm201, %v702, %v701
  %v704 = vsel %vm204, %v675, %v703
  %v705 = vrot.slane %v676, 7
  %v706 = vsel %vm207, %v705, %v704
  %708 = vmatpush.msra.mxu0 %v118
  %709 = vmatpush.msra.mxu0 %v117
  %710 = vmatpush.msra.mxu0 %v116
  %711 = vmatpush.msra.mxu0 %v115
  %712 = vmatpush.msra.mxu0 %v114
  %713 = vmatpush.msra.mxu0 %v113
  %714 = vmatpush.msra.mxu0 %v112
  %715 = vmatpush.msra.mxu0 %v111
  %716 = vmatpush.msra.mxu0 %v110
  %717 = vmatpush.msra.mxu0 %v109
  %718 = vmatpush.msra.mxu0 %v108
  %719 = vmatpush.msra.mxu0 %v107
  %720 = vmatpush.msra.mxu0 %v106
  %721 = vmatpush.msra.mxu0 %v105
  %722 = vmatpush.msra.mxu0 %v104
  %723 = vmatpush.msra.mxu0 %v103
  %724 = vmatmul.f32.gmra.mxu0 %v706
  %v725 = vpop.f32.mrf.mxu0
  %v726 = vadd.f32 0.0, %v725
  %727 = vdwg.mxu0
  %v729 = vrot.slane %v726, 1
  %v730 = vrot.slane %v726, 2
  %v731 = vrot.slane %v726, 3
  %v732 = vrot.slane %v726, 4
  %v733 = vrot.slane %v726, 5
  %v734 = vrot.slane %v726, 6
  %v735 = vrot.slane %v726, 7
  %v744 = vadd.f32 %v80, %v729
  %v745 = vadd.f32 %v83, %v730
  %v746 = vadd.f32 %v86, %v731
  %v747 = vadd.f32 %v89, %v732
  %v748 = vadd.f32 %v92, %v733
  %v749 = vadd.f32 %v95, %v734
  %v750 = vadd.f32 %v98, %v735
  %v751 = vadd.f32 %v101, %v726
  %v752 = vtanh.pop %v744
  %v753 = vtanh.pop %v745
  %v754 = vtanh.pop %v746
  %v755 = vtanh.pop %v747
  %v756 = vtanh.pop %v748
  %v757 = vtanh.pop %v749
  %v758 = vtanh.pop %v750
  %v759 = vtanh.pop %v751
  %760 = vst [vmem:[#allocation3] sm:$0x80] %v752
  %761 = vst [vmem:[#allocation3 + $0x8] sm:$0x80] %v753
  %762 = vst [vmem:[#allocation3 + $0x10] sm:$0x80] %v754
  %763 = vst [vmem:[#allocation3 + $0x18] sm:$0x80] %v755
  %764 = vst [vmem:[#allocation3 + $0x20] sm:$0x80] %v756
  %765 = vst [vmem:[#allocation3 + $0x28] sm:$0x80] %v757
  %766 = vst [vmem:[#allocation3 + $0x30] sm:$0x80] %v758
  %767 = vst [vmem:[#allocation3 + $0x38] sm:$0x80] %v759
  %v776 = vrot.slane %v753, 7
  %v777 = vrot.slane %v754, 6
  %v778 = vsel %vm189, %v777, %v776
  %v779 = vrot.slane %v755, 5
  %v780 = vsel %vm192, %v779, %v778
  %v781 = vrot.slane %v756, 4
  %v782 = vsel %vm195, %v781, %v780
  %v783 = vrot.slane %v757, 3
  %v784 = vsel %vm198, %v783, %v782
  %v785 = vrot.slane %v758, 2
  %v786 = vsel %vm201, %v785, %v784
  %v787 = vrot.slane %v759, 1
  %v788 = vsel %vm204, %v787, %v786
  %791 = vst [vmem:[#allocation2 - $0x7] sm:$0x80] %v752
  %792 = vst [vmem:[#allocation2 + $0x1] sm:$0x7f] %v788
  %v793 = vld [vmem:[#allocation3] sm:$0xff]
  %v794 = vld [vmem:[#allocation3 + $0x8] sm:$0xff]
  %v795 = vld [vmem:[#allocation3 + $0x10] sm:$0xff]
  %v796 = vld [vmem:[#allocation3 + $0x18] sm:$0xff]
  %v797 = vld [vmem:[#allocation3 + $0x20] sm:$0xff]
  %v798 = vld [vmem:[#allocation3 + $0x28] sm:$0xff]
  %v799 = vld [vmem:[#allocation3 + $0x30] sm:$0xff]
  %v800 = vld [vmem:[#allocation3 + $0x38] sm:$0xff]
  %v801 = vld [vmem:[%s5] sm:$0xff]
  %v802 = vld [vmem:[%s5 + $0x8] sm:$0xff]
  %v803 = vld [vmem:[%s5 + $0x10] sm:$0xff]
  %v804 = vld [vmem:[%s5 + $0x18] sm:$0xff]
  %v805 = vld [vmem:[%s5 + $0x20] sm:$0xff]
  %v806 = vld [vmem:[%s5 + $0x28] sm:$0xff]
  %v807 = vld [vmem:[%s5 + $0x30] sm:$0xff]
  %v808 = vld [vmem:[%s5 + $0x38] sm:$0xff]
  %v809 = vld [vmem:[%s5 + $0x40] sm:$0xff]
  %v810 = vld [vmem:[%s5 + $0x48] sm:$0xff]
  %v811 = vld [vmem:[%s5 + $0x50] sm:$0xff]
  %v812 = vld [vmem:[%s5 + $0x58] sm:$0xff]
  %v813 = vld [vmem:[%s5 + $0x60] sm:$0xff]
  %v814 = vld [vmem:[%s5 + $0x68] sm:$0xff]
  %v815 = vld [vmem:[%s5 + $0x70] sm:$0xff]
  %v816 = vld [vmem:[%s5 + $0x78] sm:$0xff]
  %v817 = vld [vmem:[%s6] sm:$0x1]
  %v819 = vperm.slane %v817, 0
  %821 = vmatpush.msra.mxu0 %v816
  %822 = vmatpush.msra.mxu0 %v815
  %823 = vmatpush.msra.mxu0 %v814
  %824 = vmatpush.msra.mxu0 %v813
  %825 = vmatpush.msra.mxu0 %v812
  %826 = vmatpush.msra.mxu0 %v811
  %827 = vmatpush.msra.mxu0 %v810
  %828 = vmatpush.msra.mxu0 %v809
  %829 = vmatpush.msra.mxu0 %v808
  %830 = vmatpush.msra.mxu0 %v807
  %831 = vmatpush.msra.mxu0 %v806
  %832 = vmatpush.msra.mxu0 %v805
  %833 = vmatpush.msra.mxu0 %v804
  %834 = vmatpush.msra.mxu0 %v803
  %835 = vmatpush.msra.mxu0 %v802
  %836 = vmatpush.msra.mxu0 %v801
  %837 = vmatmul.f32.gmra.mxu0 %v793
  %v838 = vpop.f32.mrf.mxu0
  %v839 = vadd.f32 %v819, %v838
  %840 = vmatmul.f32.gmra.mxu0 %v794
  %v841 = vpop.f32.mrf.mxu0
  %v842 = vadd.f32 %v819, %v841
  %843 = vmatmul.f32.gmra.mxu0 %v795
  %v844 = vpop.f32.mrf.mxu0
  %v845 = vadd.f32 %v819, %v844
  %846 = vmatmul.f32.gmra.mxu0 %v796
  %v847 = vpop.f32.mrf.mxu0
  %v848 = vadd.f32 %v819, %v847
  %849 = vmatmul.f32.gmra.mxu0 %v797
  %v850 = vpop.f32.mrf.mxu0
  %v851 = vadd.f32 %v819, %v850
  %852 = vmatmul.f32.gmra.mxu0 %v798
  %v853 = vpop.f32.mrf.mxu0
  %v854 = vadd.f32 %v819, %v853
  %855 = vmatmul.f32.gmra.mxu0 %v799
  %v856 = vpop.f32.mrf.mxu0
  %v857 = vadd.f32 %v819, %v856
  %858 = vmatmul.f32.gmra.mxu0 %v800
  %v859 = vpop.f32.mrf.mxu0
  %v860 = vadd.f32 %v819, %v859
  %861 = vdwg.mxu0
  %862 = vst [vmem:[%s7] sm:$0xff] %v839
  %863 = vst [vmem:[%s7 + $0x8] sm:$0xff] %v842
  %864 = vst [vmem:[%s7 + $0x10] sm:$0xff] %v845
  %865 = vst [vmem:[%s7 + $0x18] sm:$0xff] %v848
  %866 = vst [vmem:[%s7 + $0x20] sm:$0xff] %v851
  %867 = vst [vmem:[%s7 + $0x28] sm:$0xff] %v854
  %868 = vst [vmem:[%s7 + $0x30] sm:$0xff] %v857
  %869 = vst [vmem:[%s7 + $0x38] sm:$0xff] %v860
  // Predicated region
  $region34: #{rnn_forward.1} parent=0 // pred_check
    %p870 = pneg %p28
  $region35: #{rnn_forward.1} parent=0 // pred_check_branch
    %872 = sbr.rel (%p870) target = $region37
  $region36: #{rnn_forward.1} parent=0 // pred_region
    %873 = vst [vmem:[%s8 - $0x7] sm:$0x80] %v752
    %874 = vst [vmem:[%s8 + $0x1] sm:$0x7f] %v788
  $region37: #{rnn_forward.1} parent=0 // pred_fallthru
    _
  // Predicated region
  $region38: #{rnn_forward.1} parent=0 // pred_check
    _
  $region39: #{rnn_forward.1} parent=0 // pred_check_branch
    %876 = sbr.rel (0) target = $region41
  $region40: #{rnn_forward.1} parent=0 // pred_region
    _
  $region41: #{rnn_forward.1} parent=0 // pred_fallthru
    _
  // Predicated region
  $region42: #{rnn_forward.1} parent=0 // pred_check
    _
  $region43: #{rnn_forward.1} parent=0 // pred_check_branch
    %878 = sbr.rel (0) target = $region45
  $region44: #{rnn_forward.1} parent=0 // pred_region
    _
  $region45: #{rnn_forward.1} parent=0 // pred_fallthru
    _
  // Predicated region
  $region46: #{rnn_forward.1} parent=0 // pred_check
    _
  $region47: #{rnn_forward.1} parent=0 // pred_check_branch
    %880 = sbr.rel (0) target = $region49
  $region48: #{rnn_forward.1} parent=0 // pred_region
    _
  $region49: #{rnn_forward.1} parent=0 // pred_fallthru
    _
  // Predicated region
  $region50: #{rnn_forward.1} parent=0 // pred_check
    _
  $region51: #{rnn_forward.1} parent=0 // pred_check_branch
    %882 = sbr.rel (0) target = $region53
  $region52: #{rnn_forward.1} parent=0 // pred_region
    _
  $region53: #{rnn_forward.1} parent=0 // pred_fallthru
    _

</llo_original>
